<compile_context>
chip_gen: v7x
topology: tpu7x:2x2x1
jax: 0.10.0
libtpu: 0.0.40
codegen_flags: <defaults>
</compile_context>

<pallas_src>
import functools

import jax
import jax.numpy as jnp
from jax.experimental import pallas as pl
from jax.experimental.pallas import tpu as pltpu


def _neural_f_kernel(t_ref, xT_ref, w1c0_ref, w1c1_ref, b1_ref, w2T_ref, b2_ref,
                     oT_ref, *, oscillate: bool):
    # Inputs are laid out (features, batch): batch on the 128-lane axis.
    x0 = xT_ref[0:1, :]                       # (1, TB)
    x1 = xT_ref[1:2, :]                       # (1, TB)

    # Layer 1 (K=2 contraction) on the VPU as broadcast FMAs:
    #   h[w, b] = w1[0, w] * x[b, 0] + w1[1, w] * x[b, 1] + b1[w]
    h = jnp.tanh(w1c0_ref[...] * x0 +         # (W, 1) * (1, TB) -> (W, TB)
                 w1c1_ref[...] * x1 +
                 b1_ref[...])                 # (W, 1) broadcasts over batch

    # Layer 2: (2, W) @ (W, TB) -> (2, TB); output stays lane-dense in batch.
    out = jnp.dot(w2T_ref[...], h, preferred_element_type=jnp.float32)
    out = jnp.tanh(out + b2_ref[...])         # (2, 1) broadcasts

    if oscillate:
        out = out * jnp.sin(t_ref[0] * 20.0)  # scalar from SMEM, hoisted once

    oT_ref[...] = out.astype(oT_ref.dtype)


def prepare_neural_f_params(w1, b1, w2, b2):
    """One-time layout/dtype conversion (keep off the per-evaluation hot path).

    Logical params (x @ w1 + b1 semantics): w1 (2, W), b1 (W,), w2 (W, 2), b2 (2,).
    Kernel layout: w1 columns as (W, 1) each, b1 (W, 1), w2T (2, W), b2 (2, 1), f32.
    """
    w1 = jnp.asarray(w1, jnp.float32)
    w1c0 = w1[0].reshape(-1, 1)
    w1c1 = w1[1].reshape(-1, 1)
    b1c = jnp.asarray(b1, jnp.float32).reshape(-1, 1)
    w2T = jnp.asarray(w2, jnp.float32).T
    b2c = jnp.asarray(b2, jnp.float32).reshape(-1, 1)
    return w1c0, w1c1, b1c, w2T, b2c


def _pick_batch_tile(B):
    for tb in (2048, 1024, 512, 256, 128):
        if B % tb == 0:
            return tb
    return B  # small / ragged batch: one tile covering the whole batch


@functools.partial(jax.jit, static_argnames=("oscillate",))
def neural_f_forward(t, x, params, *, oscillate=True):
    """t: scalar, x: (B, 2), params from prepare_neural_f_params. Returns (B, 2)."""
    w1c0, w1c1, b1c, w2T, b2c = params
    B = x.shape[0]
    W = w1c0.shape[0]
    TB = _pick_batch_tile(B)
    grid = (B // TB,)

    t_arr = jnp.reshape(jnp.asarray(t, jnp.float32), (1,))
    xT = jnp.asarray(x, jnp.float32).T        # (2, B): batch on the lane axis

    kernel = functools.partial(_neural_f_kernel, oscillate=oscillate)

    smem = pl.BlockSpec(memory_space=pltpu.MemorySpace.SMEM)

    def full(shape):  # whole-array block, constant index -> stays resident in VMEM
        return pl.BlockSpec(shape, lambda i: (0, 0))

    outT = pl.pallas_call(
        kernel,
        out_shape=jax.ShapeDtypeStruct((2, B), jnp.float32),
        grid=grid,
        in_specs=[
            smem,                                      # t (scalar in SMEM)
            pl.BlockSpec((2, TB), lambda i: (0, i)),   # xT, tiled over batch
            full((W, 1)),                              # w1 column 0
            full((W, 1)),                              # w1 column 1
            full((W, 1)),                              # b1
            full((2, W)),                              # w2^T
            full((2, 1)),                              # b2
        ],
        out_specs=pl.BlockSpec((2, TB), lambda i: (0, i)),
        compiler_params=pltpu.CompilerParams(
            dimension_semantics=("parallel",)),
    )(t_arr, xT, w1c0, w1c1, b1c, w2T, b2c)

    return outT.T                              # back to (B, 2)


def _reference(t, x, w1, b1, w2, b2, oscillate):
    h = jnp.tanh(x @ w1 + b1)
    out = jnp.tanh(h @ w2 + b2)
    if oscillate:
        out = out * jnp.sin(20.0 * t)
    return out


if __name__ == "__main__":
    width = 32
    batch = 8
    oscillate = True

    key = jax.random.PRNGKey(0)
    k_x, k_w1, k_b1, k_w2, k_b2 = jax.random.split(key, 5)

    # Deterministic parameter init (uniform, roughly matching nn.Linear scale).
    w1 = jax.random.uniform(k_w1, (2, width), jnp.float32, -0.7, 0.7)
    b1 = jax.random.uniform(k_b1, (width,), jnp.float32, -0.7, 0.7)
    w2 = jax.random.uniform(k_w2, (width, 2), jnp.float32, -0.2, 0.2)
    b2 = jax.random.uniform(k_b2, (2,), jnp.float32, -0.2, 0.2)

    x = jax.random.normal(k_x, (batch, 2), jnp.float32)
    t = jnp.float32(0.35)

    params = prepare_neural_f_params(w1, b1, w2, b2)   # one-time, outside hot loop
    out = neural_f_forward(t, x, params, oscillate=oscillate)
    out = jax.block_until_ready(out)

    ref = _reference(t, x, w1, b1, w2, b2, oscillate)
    assert out.shape == (batch, 2)
    assert jnp.allclose(out, ref, atol=1e-5, rtol=1e-5)

    # Also exercise a lane-dense, gridded batch (TB=128 tiles, "parallel" axis).
    xb = jax.random.normal(k_x, (512, 2), jnp.float32)
    outb = jax.block_until_ready(neural_f_forward(t, xb, params, oscillate=oscillate))
    refb = _reference(t, xb, w1, b1, w2, b2, oscillate)
    assert jnp.allclose(outb, refb, atol=1e-5, rtol=1e-5)

    print("KERNEL_OK")
</pallas_src>

<mosaic_0001>
module attributes {stable_mosaic.version = 11 : i64} {
  func.func @_neural_f_kernel(%arg0: i32, %arg1: memref<1xf32, #tpu.memory_space<smem>>, %arg2: memref<2x8xf32, #tpu.memory_space<vmem>>, %arg3: memref<32x1xf32, #tpu.memory_space<vmem>>, %arg4: memref<32x1xf32, #tpu.memory_space<vmem>>, %arg5: memref<32x1xf32, #tpu.memory_space<vmem>>, %arg6: memref<2x32xf32, #tpu.memory_space<vmem>>, %arg7: memref<2x1xf32, #tpu.memory_space<vmem>>, %arg8: memref<2x8xf32, #tpu.memory_space<vmem>>) attributes {dimension_semantics = [#tpu.dimension_semantics<parallel>], iteration_bounds = array<i64: 1>, scalar_prefetch = 0 : i64, scratch_operands = 0 : i64, tpu.core_type = #tpu.core_type<tc>, window_params = [{transform_indices = @transform_0, window_bounds = array<i64: 1>}, {transform_indices = @transform_1, window_bounds = array<i64: 2, 8>}, {pipeline_mode = #tpu.pipeline_mode<synchronous>, transform_indices = @transform_2, window_bounds = array<i64: 32, 1>}, {pipeline_mode = #tpu.pipeline_mode<synchronous>, transform_indices = @transform_3, window_bounds = array<i64: 32, 1>}, {pipeline_mode = #tpu.pipeline_mode<synchronous>, transform_indices = @transform_4, window_bounds = array<i64: 32, 1>}, {pipeline_mode = #tpu.pipeline_mode<synchronous>, transform_indices = @transform_5, window_bounds = array<i64: 2, 32>}, {pipeline_mode = #tpu.pipeline_mode<synchronous>, transform_indices = @transform_6, window_bounds = array<i64: 2, 1>}, {transform_indices = @transform_7, window_bounds = array<i64: 2, 8>}]} {
    %c0 = arith.constant 0 : index
    %c0_0 = arith.constant 0 : index
    %0 = vector.load %arg2[%c0, %c0_0] : memref<2x8xf32, #tpu.memory_space<vmem>>, vector<1x8xf32>
    %c1 = arith.constant 1 : index
    %c0_1 = arith.constant 0 : index
    %1 = vector.load %arg2[%c1, %c0_1] : memref<2x8xf32, #tpu.memory_space<vmem>>, vector<1x8xf32>
    %c0_2 = arith.constant 0 : index
    %c0_3 = arith.constant 0 : index
    %2 = vector.load %arg3[%c0_2, %c0_3] : memref<32x1xf32, #tpu.memory_space<vmem>>, vector<32x1xf32>
    %3 = vector.broadcast %2 : vector<32x1xf32> to vector<32x8xf32>
    %4 = vector.broadcast %0 : vector<1x8xf32> to vector<32x8xf32>
    %5 = arith.mulf %3, %4 : vector<32x8xf32>
    %c0_4 = arith.constant 0 : index
    %c0_5 = arith.constant 0 : index
    %6 = vector.load %arg4[%c0_4, %c0_5] : memref<32x1xf32, #tpu.memory_space<vmem>>, vector<32x1xf32>
    %7 = vector.broadcast %6 : vector<32x1xf32> to vector<32x8xf32>
    %8 = vector.broadcast %1 : vector<1x8xf32> to vector<32x8xf32>
    %9 = arith.mulf %7, %8 : vector<32x8xf32>
    %10 = arith.addf %5, %9 : vector<32x8xf32>
    %c0_6 = arith.constant 0 : index
    %c0_7 = arith.constant 0 : index
    %11 = vector.load %arg5[%c0_6, %c0_7] : memref<32x1xf32, #tpu.memory_space<vmem>>, vector<32x1xf32>
    %12 = vector.broadcast %11 : vector<32x1xf32> to vector<32x8xf32>
    %13 = arith.addf %10, %12 : vector<32x8xf32>
    %14 = math.tanh %13 : vector<32x8xf32>
    %c0_8 = arith.constant 0 : index
    %c0_9 = arith.constant 0 : index
    %15 = vector.load %arg6[%c0_8, %c0_9] : memref<2x32xf32, #tpu.memory_space<vmem>>, vector<2x32xf32>
    %cst = arith.constant dense<0.000000e+00> : vector<2x8xf32>
    %16 = tpu.matmul %15, %14, %cst {dimension_numbers = #tpu.dot_dimension_numbers<[1], [0], [0], [1], [0, 0, 1, 1], [], []>} : vector<2x32xf32>, vector<32x8xf32>, vector<2x8xf32> -> vector<2x8xf32>
    %c0_10 = arith.constant 0 : index
    %c0_11 = arith.constant 0 : index
    %17 = vector.load %arg7[%c0_10, %c0_11] : memref<2x1xf32, #tpu.memory_space<vmem>>, vector<2x1xf32>
    %18 = vector.broadcast %17 : vector<2x1xf32> to vector<2x8xf32>
    %19 = arith.addf %16, %18 : vector<2x8xf32>
    %20 = math.tanh %19 : vector<2x8xf32>
    %c0_12 = arith.constant 0 : index
    %21 = memref.load %arg1[%c0_12] : memref<1xf32, #tpu.memory_space<smem>>
    %cst_13 = arith.constant 2.000000e+01 : f32
    %22 = arith.mulf %21, %cst_13 : f32
    %23 = math.sin %22 : f32
    %24 = vector.broadcast %23 : f32 to vector<2x8xf32>
    %25 = arith.mulf %20, %24 : vector<2x8xf32>
    %c0_14 = arith.constant 0 : index
    %c0_15 = arith.constant 0 : index
    %26 = vector.load %arg8[%c0_14, %c0_15] : memref<2x8xf32, #tpu.memory_space<vmem>>, vector<2x8xf32>
    tpu.vector_store %arg8[%c0_14, %c0_15], %25 {strides = array<i32>} : memref<2x8xf32, #tpu.memory_space<vmem>>, vector<2x8xf32>,
    return
  }
  func.func @transform_0(%arg0: i32) -> i32 {
    %c0_i32 = arith.constant 0 : i32
    %c0_i32_0 = arith.constant 0 : i32
    return %c0_i32 : i32
  }
  func.func @transform_1(%arg0: i32) -> (i32, i32) {
    %c0_i32 = arith.constant 0 : i32
    %c0_i32_0 = arith.constant 0 : i32
    return %c0_i32, %arg0 : i32, i32
  }
  func.func @transform_2(%arg0: i32) -> (i32, i32) {
    %c0_i32 = arith.constant 0 : i32
    %c0_i32_0 = arith.constant 0 : i32
    %c0_i32_1 = arith.constant 0 : i32
    return %c0_i32, %c0_i32_0 : i32, i32
  }
  func.func @transform_3(%arg0: i32) -> (i32, i32) {
    %c0_i32 = arith.constant 0 : i32
    %c0_i32_0 = arith.constant 0 : i32
    %c0_i32_1 = arith.constant 0 : i32
    return %c0_i32, %c0_i32_0 : i32, i32
  }
  func.func @transform_4(%arg0: i32) -> (i32, i32) {
    %c0_i32 = arith.constant 0 : i32
    %c0_i32_0 = arith.constant 0 : i32
    %c0_i32_1 = arith.constant 0 : i32
    return %c0_i32, %c0_i32_0 : i32, i32
  }
  func.func @transform_5(%arg0: i32) -> (i32, i32) {
    %c0_i32 = arith.constant 0 : i32
    %c0_i32_0 = arith.constant 0 : i32
    %c0_i32_1 = arith.constant 0 : i32
    return %c0_i32, %c0_i32_0 : i32, i32
  }
  func.func @transform_6(%arg0: i32) -> (i32, i32) {
    %c0_i32 = arith.constant 0 : i32
    %c0_i32_0 = arith.constant 0 : i32
    %c0_i32_1 = arith.constant 0 : i32
    return %c0_i32, %c0_i32_0 : i32, i32
  }
  func.func @transform_7(%arg0: i32) -> (i32, i32) {
    %c0_i32 = arith.constant 0 : i32
    %c0_i32_0 = arith.constant 0 : i32
    return %c0_i32, %arg0 : i32, i32
  }
}

</mosaic_0001>

<llo_original>
// kernel: neural_f_forward.1
$region0: #{neural_f_forward.1}
  #allocation0 [shape = 'u32[]', space=smem, size = 0x4, offset = 0x4, fixed_abs, tag = 'smem constant byte address 0x4 - core index']
  #allocation1 [shape = 'u32[144,128]{1,0:T(1,128)}', space=vmem, size = 0x12000, scoped, tag = 'internal scratch']
  #allocation2 [shape = 'f32[1]{0:T(128)S(6)}', space=smem, size = 0x200, scoped, tag = 'scoped memory for neural_f_forward.1']
  %s0 = inlined_call_operand.<no memory space> [shape: f32[1], index: 0, kind: input, shape index: {}]
  %s1 = inlined_call_operand.vmem [shape: f32[2,8], index: 1, kind: input, shape index: {}]
  %s2 = inlined_call_operand.vmem [shape: f32[32,1], index: 2, kind: input, shape index: {}]
  %s3 = inlined_call_operand.vmem [shape: f32[32,1], index: 3, kind: input, shape index: {}]
  %s4 = inlined_call_operand.vmem [shape: f32[32,1], index: 4, kind: input, shape index: {}]
  %s5 = inlined_call_operand.vmem [shape: f32[2,32], index: 5, kind: input, shape index: {}]
  %s6 = inlined_call_operand.vmem [shape: f32[2,1], index: 6, kind: input, shape index: {}]
  %s7 = inlined_call_operand.hbm [shape: f32[2,8], index: 7, kind: output, shape index: {}]
  %s8 = sld [smem:[#allocation0]]
  $region38: #{neural_f_forward.1} parent=0
    _
  %s10 = ssub.s32 1, %s8
  %s11 = scalar_select 0, %s10, %s8
  %12 = sst [smem:[#allocation2]] %s0
  $region1: #{neural_f_forward.1} parent=0
    #allocation3 [shape = 'u8[1024]{0}', space=vmem, size = 0x400, scoped, tag = 'output window, operand 0, single buffered']
    #allocation4 [shape = 's32[1]{0}', space=sflag, size = 0x4, scoped, tag = 'scoped memory for neural_f_forward.1']
    %13 = vsyncpa [#allocation4], 0
    // Predicated region
    $region2: #{neural_f_forward.1} parent=1 // pred_check
      _
    $region3: #{neural_f_forward.1} parent=1 // pred_check_branch
      %15 = sbr.rel (0) target = $region5
    $region4: #{neural_f_forward.1} parent=1 // pred_region
      _
    $region5: #{neural_f_forward.1} parent=1 // pred_fallthru
      _
    // Predicated region
    $region6: #{neural_f_forward.1} parent=1 // pred_check
      _
    $region7: #{neural_f_forward.1} parent=1 // pred_check_branch
      %17 = sbr.rel (0) target = $region9
    $region8: #{neural_f_forward.1} parent=1 // pred_region
      _
    $region9: #{neural_f_forward.1} parent=1 // pred_fallthru
      _
    // Predicated region
    $region10: #{neural_f_forward.1} parent=1 // pred_check
      _
    $region11: #{neural_f_forward.1} parent=1 // pred_check_branch
      %19 = sbr.rel (0) target = $region13
    $region12: #{neural_f_forward.1} parent=1 // pred_region
      _
    $region13: #{neural_f_forward.1} parent=1 // pred_fallthru
      _
    // Predicated region
    $region14: #{neural_f_forward.1} parent=1 // pred_check
      _
    $region15: #{neural_f_forward.1} parent=1 // pred_check_branch
      %21 = sbr.rel (0) target = $region17
    $region16: #{neural_f_forward.1} parent=1 // pred_region
      _
    $region17: #{neural_f_forward.1} parent=1 // pred_fallthru
      _
    // Predicated region
    $region18: #{neural_f_forward.1} parent=1 // pred_check
      _
    $region19: #{neural_f_forward.1} parent=1 // pred_check_branch
      %23 = sbr.rel (0) target = $region21
    $region20: #{neural_f_forward.1} parent=1 // pred_region
      _
    $region21: #{neural_f_forward.1} parent=1 // pred_fallthru
      _
    // Predicated region
    $region22: #{neural_f_forward.1} parent=1 // pred_check
      _
    $region23: #{neural_f_forward.1} parent=1 // pred_check_branch
      %25 = sbr.rel (0) target = $region25
    $region24: #{neural_f_forward.1} parent=1 // pred_region
      _
    $region25: #{neural_f_forward.1} parent=1 // pred_fallthru
      _
    // Predicated region
    $region26: #{neural_f_forward.1} parent=1 // pred_check
      _
    $region27: #{neural_f_forward.1} parent=1 // pred_check_branch
      %27 = sbr.rel (0) target = $region29
    $region28: #{neural_f_forward.1} parent=1 // pred_region
      _
    $region29: #{neural_f_forward.1} parent=1 // pred_fallthru
      _
    %v28 = vld [vmem:[%s1] sm:$0x1]
    %v29 = vld [vmem:[%s1 + $0x1] sm:$0x1]
    %v30 = vld [vmem:[%s2] sm:$0xff]
    %v31 = vld [vmem:[%s2 + $0x8] sm:$0xff]
    %v32 = vld [vmem:[%s2 + $0x10] sm:$0xff]
    %v33 = vld [vmem:[%s2 + $0x18] sm:$0xff]
    %35 = vset.pattern.permute.xlu0 0
    %36 = vperm.xlu0 %35, %v30
    %v37 = vpop.permute.xlu0 %36
    %40 = vset.pattern.permute.xlu0 0
    %41 = vperm.xlu0 %40, %v31
    %v42 = vpop.permute.xlu0 %41
    %45 = vset.pattern.permute.xlu0 0
    %46 = vperm.xlu0 %45, %v32
    %v47 = vpop.permute.xlu0 %46
    %50 = vset.pattern.permute.xlu0 0
    %51 = vperm.xlu0 %50, %v33
    %v52 = vpop.permute.xlu0 %51
    %v54 = vlaneseq
    %v55 = vshrl.u32 %v54, 7
    %v56 = vsub.s32 0, %v55
    %v57 = vrot.slane %v28, %v56
    %v58 = vmul.f32 %v37, %v57
    %v59 = vmul.f32 %v42, %v57
    %v60 = vmul.f32 %v47, %v57
    %v61 = vmul.f32 %v52, %v57
    %v62 = vld [vmem:[%s3] sm:$0xff]
    %v63 = vld [vmem:[%s3 + $0x8] sm:$0xff]
    %v64 = vld [vmem:[%s3 + $0x10] sm:$0xff]
    %v65 = vld [vmem:[%s3 + $0x18] sm:$0xff]
    %67 = vset.pattern.permute.xlu0 0
    %68 = vperm.xlu0 %67, %v62
    %v69 = vpop.permute.xlu0 %68
    %72 = vset.pattern.permute.xlu0 0
    %73 = vperm.xlu0 %72, %v63
    %v74 = vpop.permute.xlu0 %73
    %77 = vset.pattern.permute.xlu0 0
    %78 = vperm.xlu0 %77, %v64
    %v79 = vpop.permute.xlu0 %78
    %82 = vset.pattern.permute.xlu0 0
    %83 = vperm.xlu0 %82, %v65
    %v84 = vpop.permute.xlu0 %83
    %v86 = vlaneseq
    %v87 = vshrl.u32 %v86, 7
    %v88 = vsub.s32 0, %v87
    %v89 = vrot.slane %v29, %v88
    %v90 = vmul.f32 %v69, %v89
    %v91 = vmul.f32 %v74, %v89
    %v92 = vmul.f32 %v79, %v89
    %v93 = vmul.f32 %v84, %v89
    %v94 = vadd.f32 %v58, %v90
    %v95 = vadd.f32 %v59, %v91
    %v96 = vadd.f32 %v60, %v92
    %v97 = vadd.f32 %v61, %v93
    %v98 = vld [vmem:[%s4] sm:$0xff]
    %v99 = vld [vmem:[%s4 + $0x8] sm:$0xff]
    %v100 = vld [vmem:[%s4 + $0x10] sm:$0xff]
    %v101 = vld [vmem:[%s4 + $0x18] sm:$0xff]
    %103 = vset.pattern.permute.xlu0 0
    %104 = vperm.xlu0 %103, %v98
    %v105 = vpop.permute.xlu0 %104
    %108 = vset.pattern.permute.xlu0 0
    %109 = vperm.xlu0 %108, %v99
    %v110 = vpop.permute.xlu0 %109
    %113 = vset.pattern.permute.xlu0 0
    %114 = vperm.xlu0 %113, %v100
    %v115 = vpop.permute.xlu0 %114
    %118 = vset.pattern.permute.xlu0 0
    %119 = vperm.xlu0 %118, %v101
    %v120 = vpop.permute.xlu0 %119
    %v122 = vadd.f32 %v94, %v105
    %v123 = vadd.f32 %v95, %v110
    %v124 = vadd.f32 %v96, %v115
    %v125 = vadd.f32 %v97, %v120
    %v126 = vtanh.pop %v122
    %v127 = vtanh.pop %v123
    %v128 = vtanh.pop %v124
    %v129 = vtanh.pop %v125
    %v130 = vld [vmem:[%s5] sm:$0x3]
    %v131 = vld [vmem:[%s6] sm:$0x3]
    %133 = vset.pattern.permute.xlu0 0
    %134 = vperm.xlu0 %133, %v131
    %v135 = vpop.permute.xlu0 %134
    %vm137 = vcmask 261120
    %v139 = vsel %vm137, %v130, 0
    %141 = vmatprep.subr.mxu0 0.0
    %142 = vmatpush1.msra.mxu0 %v126
    %143 = vmatprep.subr.mxu0 0.0
    %144 = vmatpush1.msra.mxu0 %v127
    %145 = vmatprep.subr.mxu0 0.0
    %146 = vmatpush1.msra.mxu0 %v128
    %147 = vmatprep.subr.mxu0 0.0
    %148 = vmatpush1.msra.mxu0 %v129
    %149 = vmatprep.subr.mxu0 0.0
    %150 = vmatpush1.msra.mxu0 0.0
    %151 = vmatprep.subr.mxu0 0.0
    %152 = vmatpush1.msra.mxu0 0.0
    %153 = vmatprep.subr.mxu0 0.0
    %154 = vmatpush1.msra.mxu0 0.0
    %155 = vmatprep.subr.mxu0 0.0
    %156 = vmatpush1.msra.mxu0 0.0
    %157 = vmatprep.subr.mxu0 0.0
    %158 = vmatpush1.msra.mxu0 0.0
    %159 = vmatprep.subr.mxu0 0.0
    %160 = vmatpush1.msra.mxu0 0.0
    %161 = vmatprep.subr.mxu0 0.0
    %162 = vmatpush1.msra.mxu0 0.0
    %163 = vmatprep.subr.mxu0 0.0
    %164 = vmatpush1.msra.mxu0 0.0
    %165 = vmatprep.subr.mxu0 0.0
    %166 = vmatpush1.msra.mxu0 0.0
    %167 = vmatprep.subr.mxu0 0.0
    %168 = vmatpush1.msra.mxu0 0.0
    %169 = vmatprep.subr.mxu0 0.0
    %170 = vmatpush1.msra.mxu0 0.0
    %171 = vmatprep.subr.mxu0 0.0
    %172 = vmatpush1.msra.mxu0 0.0
    %173 = vmatprep.subr.mxu0 0.0
    %174 = vmatpush1.msra.mxu0 0.0
    %175 = vmatprep.subr.mxu0 0.0
    %176 = vmatpush1.msra.mxu0 0.0
    %177 = vmatprep.subr.mxu0 0.0
    %178 = vmatpush1.msra.mxu0 0.0
    %179 = vmatprep.subr.mxu0 0.0
    %180 = vmatpush1.msra.mxu0 0.0
    %181 = vmatprep.subr.mxu0 0.0
    %182 = vmatpush1.msra.mxu0 0.0
    %183 = vmatprep.subr.mxu0 0.0
    %184 = vmatpush1.msra.mxu0 0.0
    %185 = vmatprep.subr.mxu0 0.0
    %186 = vmatpush1.msra.mxu0 0.0
    %187 = vmatprep.subr.mxu0 0.0
    %188 = vmatpush1.msra.mxu0 0.0
    %189 = vmatprep.subr.mxu0 0.0
    %190 = vmatpush1.msra.mxu0 0.0
    %191 = vmatprep.subr.mxu0 0.0
    %192 = vmatpush1.msra.mxu0 0.0
    %193 = vmatprep.subr.mxu0 0.0
    %194 = vmatpush1.msra.mxu0 0.0
    %195 = vmatprep.subr.mxu0 0.0
    %196 = vmatpush1.msra.mxu0 0.0
    %197 = vmatprep.subr.mxu0 0.0
    %198 = vmatpush1.msra.mxu0 0.0
    %199 = vmatprep.subr.mxu0 0.0
    %200 = vmatpush1.msra.mxu0 0.0
    %201 = vmatprep.subr.mxu0 0.0
    %202 = vmatpush1.msra.mxu0 0.0
    %203 = vmatprep.subr.mxu0 0.0
    %204 = vmatpush1.msra.mxu0 0.0
    %205 = vmatprep.mubr.f32.mxu0 0.0
    %206 = vmatmul.mubr.f32.gmra.mrb[0].mxu0 %v139
    %v207 = vpop.f32.mrb[0].mxu0
    %v208 = vadd.f32 %v135, %v207
    %v209 = vpop.f32.mrb[0].mxu0
    %210 = vdwg.mxu0
    %v211 = vtanh.pop %v208
    %s212 = sld [smem:[#allocation2]]
    %s213 = smul.f32 %s212, 20.0
    %v214 = vstv %s213
    %v215 = vand.u32 2147483647, %v214
    %vm216 = vcmp.le.f32.partialorder %v215, 0.7853982
    %vm217 = vcmp.lt.s32.totalorder %v214, 0
    %v218 = vand.u32 %v214, 2139095040
    %v219 = vshrl.u32 %v218, 23
    %v220 = vsub.s32 %v219, 127
    %v221 = vand.u32 2147483647, %v214
    %v222 = vand.u32 %v221, 8388607
    %v223 = vor.u32 %v222, 8388608
    %v224 = vsub.s32 0, %v223
    %v225 = vadd.s32 %v220, 1
    %vm226 = vcmp.gt.s32.totalorder %v225, 0
    %v227 = vsel %vm226, %v225, 0
    %v228 = vshrl.u32 %v227, 5
    %v229 = vand.u32 %v227, 31
    %v230 = vsub.s32 32, %v229
    %v231 = vshrl.u32 683565275, %v230
    %v232 = vshll.u32 683565275, %v229
    %v233 = vshrl.u32 2475754826, %v230
    %v234 = vor.u32 %v232, %v233
    %v235 = vshll.u32 2475754826, %v229
    %v236 = vshrl.u32 2131351028, %v230
    %v237 = vor.u32 %v235, %v236
    %v238 = vshll.u32 2131351028, %v229
    %v239 = vshrl.u32 2102212464, %v230
    %v240 = vor.u32 %v238, %v239
    %v241 = vshll.u32 2102212464, %v229
    %v242 = vshrl.u32 920167782, %v230
    %v243 = vor.u32 %v241, %v242
    %v244 = vshll.u32 920167782, %v229
    %v245 = vshrl.u32 1326507024, %v230
    %v246 = vor.u32 %v244, %v245
    %vm247 = vcmp.lt.s32.totalorder %v228, 1
    %vm248 = vcmp.lt.s32.totalorder %v228, 2
    %vm249 = vcmp.lt.s32.totalorder %v228, 3
    %vm250 = vcmp.lt.s32.totalorder %v228, 4
    %v251 = vsel %vm247, %v231, %v234
    %v252 = vsel %vm250, %v240, 2102212464
    %v253 = vsel %vm249, %v237, %v252
    %v254 = vsel %vm248, %v251, %v253
    %v255 = vsel %vm247, %v234, %v237
    %v256 = vsel %vm250, %v243, 920167782
    %v257 = vsel %vm249, %v240, %v256
    %v258 = vsel %vm248, %v255, %v257
    %v259 = vsel %vm247, %v237, %v240
    %v260 = vsel %vm250, %v246, 1326507024
    %v261 = vsel %vm249, %v243, %v260
    %v262 = vsel %vm248, %v259, %v261
    %v263 = vshll.u32 %v223, 8
    %v264 = vmul.u32.u64.compose %v263, %v262
    %v265 = vextract.low.u32 %v264
    %v266 = vextract.high.u32 %v264
    %v267 = vmul.u32.u64.compose %v263, %v258
    %v268 = vextract.low.u32 %v267
    %v269 = vextract.high.u32 %v267
    %v270 = vmul.u32 %v263, %v254
    %v271 = vadd.s32 %v266, %v268
    %vm272 = vc.u32 %v266, %v268
    %v273 = vadd.s32 %v269, 1
    %v274 = vsel %vm272, %v273, %v269
    %v275 = vadd.s32 %v270, %v274
    %v276 = vadd.s32 %v275, 536870912
    %v277 = vshrl.u32 %v276, 30
    %v278 = vshll.u32 %v277, 30
    %v279 = vsub.s32 %v275, %v278
    %vm280 = vcmp.lt.s32.totalorder %v279, 0
    %v281 = vsub.s32 0, %v279
    %v282 = vsel %vm280, %v281, %v279
    %v283 = vclz %v282
    %v284 = vsub.s32 %v283, 2
    %vm285 = vcmp.gt.s32.totalorder 0, %v284
    %v286 = vsel %vm285, 0, %v284
    %v287 = vsub.s32 32, %v286
    %v288 = vshll.u32 %v279, %v286
    %v289 = vshrl.u32 %v271, %v287
    %v290 = vor.u32 %v288, %v289
    %v291 = vsub.s32 4294967266, %v286
    %v292 = vadd.s32 %v291, 127
    %v293 = vshll.u32 %v292, 23
    %v294 = vor.u32 4788187, %v293
    %v295 = vand.u32 2147483647, %v294
    %v297 = vcvt.s32.f32 %v290
    %v298 = vmul.f32 %v297, %v295
    %v299 = vxor.u32 %v298, 2147483648
    %v300 = vsel %vm217, %v299, %v298
    %v301 = vsub.s32 4, %v277
    %v302 = vsel %vm217, %v301, %v277
    %v303 = vsel %vm216, %v214, %v300
    %v304 = vsel %vm216, 0, %v302
    %v305 = vcosq.f32.pop %v303
    %v306 = vsinq.f32.pop %v303
    %vm307 = vweird.f32 %v214
    %v308 = vadd.s32 %v304, 3
    %v309 = vand.u32 %v308, 3
    %vm310 = vcmp.lt.s32.totalorder %v309, 2
    %vm311 = vcmp.eq.s32.totalorder %v309, 0
    %v312 = vxor.u32 %v306, 2147483648
    %v313 = vsel %vm311, %v305, %v312
    %vm314 = vcmp.eq.s32.totalorder %v309, 2
    %v315 = vxor.u32 %v305, 2147483648
    %v316 = vsel %vm314, %v315, %v306
    %v317 = vsel %vm310, %v313, %v316
    %v318 = vsel %vm307, nan, %v317
    %s319 = vtos %v318
    %v320 = vstv %s319
    %v321 = vmul.f32 %v211, %v320
    %vm322 = vcmask 58368
    %323 = vst.msk [vmem:[#allocation3] sm:$0x3] %vm322, %v321
    // Predicated region
    $region30: #{neural_f_forward.1} parent=1 // pred_check
      _
    $region31: #{neural_f_forward.1} parent=1 // pred_check_branch
      %325 = sbr.rel (0) target = $region33
    $region32: #{neural_f_forward.1} parent=1 // pred_region
      %s327 = ssub.s32 32, 32
      %328 = vsyncadd [#allocation4], %s327
      %s330 = sshll.u32 [#allocation3], 4
      %s331 = int_to_ptr.vmem [resolvable:$true] %s330
      %333 = dma.vmem_to_hbm [thread:$0]  %s331, 32, %s7, [#allocation4]
    $region33: #{neural_f_forward.1} parent=1 // pred_fallthru
      _
    // Predicated region
    $region34: #{neural_f_forward.1} parent=1 // pred_check
      _
    $region35: #{neural_f_forward.1} parent=1 // pred_check_branch
      %335 = sbr.rel (0) target = $region37
    $region36: #{neural_f_forward.1} parent=1 // pred_region
      %336 = dma.done [#allocation4], 32
    $region37: #{neural_f_forward.1} parent=1 // pred_fallthru
      _
    %337 = vsyncpa [#allocation4], 1

</llo_original>
